<compile_context>
chip_gen: v7x
topology: tpu7x:2x2x1
jax: 0.10.0
libtpu: 0.0.40
codegen_flags: <defaults>
</compile_context>

<pallas_src>
import functools
import numpy as np
import jax
import jax.numpy as jnp
from jax import lax
from jax.experimental import pallas as pl
from jax.experimental.pallas import tpu as pltpu

_LN2 = float(np.log(2.0))


def _round_up(v, m):
    return ((v + m - 1) // m) * m


def _pick_tile(total, target, align):
    """Largest divisor of `total` that is a multiple of `align` and <= target, else `total`."""
    if total <= target:
        return total
    d = (target // align) * align
    while d >= align:
        if total % d == 0:
            return d
        d -= align
    return total


# ----------------------------------------------------------------------------------
# Kernel A: per-pixel CE / argmax + partial sums for weighted-CE and lc-dice.
# Blocks: x (1, C, TW) classes-on-sublanes / pixels-on-lanes; t/L/A (1, 1, TW).
# Per-batch accumulators are revisited output blocks (init at pixel-tile 0).
# ----------------------------------------------------------------------------------
def _pixel_stats_kernel(x_ref, t_ref, l_ref, a_ref,
                        cnt_ref, lsum_ref, lc_ref, it_ref, ss_ref):
    g = pl.program_id(1)

    @pl.when(g == 0)
    def _init():
        cnt_ref[...] = jnp.zeros_like(cnt_ref)
        lsum_ref[...] = jnp.zeros_like(lsum_ref)
        lc_ref[...] = jnp.zeros_like(lc_ref)
        it_ref[...] = jnp.zeros_like(it_ref)
        ss_ref[...] = jnp.zeros_like(ss_ref)

    c = x_ref.shape[1]
    tw = x_ref.shape[2]
    x = x_ref[0]                                     # (C, TW) logits
    t = t_ref[:, 0, :]                               # (1, TW) int32 labels
    ci = lax.broadcasted_iota(jnp.int32, (c, tw), 0)
    oh = (t == ci).astype(jnp.float32)               # (C, TW) one-hot target

    # --- per-pixel cross entropy (reduction='none'): L = logsumexp(x) - x[target] ---
    m = jnp.max(x, axis=0, keepdims=True)            # (1, TW)
    e = jnp.exp(x - m)
    lse = jnp.log(jnp.sum(e, axis=0, keepdims=True)) + m
    xt = jnp.sum(x * oh, axis=0, keepdims=True)
    lpix = lse - xt                                  # (1, TW)
    l_ref[:, 0, :] = lpix

    # --- argmax over classes (first maximal index) ---
    candf = jnp.where(x >= m, ci.astype(jnp.float32), jnp.float32(c))
    a_ref[:, 0, :] = jnp.min(candf, axis=0, keepdims=True).astype(jnp.int32)

    # --- partial sums for the class-frequency-weighted CE (finalized in jnp) ---
    cnt_ref[0] += jnp.sum(oh, axis=1, keepdims=True)           # (C, 1) class counts
    lsum_ref[0] += jnp.sum(oh * lpix, axis=1, keepdims=True)   # (C, 1) per-class CE sums

    # --- lc-dice partials: sigmoid probs vs one-hot targets ---
    sig = pl.reciprocal(1.0 + jnp.exp(-x), approx=True)        # (C, TW)
    ad = jnp.abs(sig - oh)                                     # |d| <= 1
    lc = ad + jnp.log(1.0 + jnp.exp(-2.0 * ad)) - _LN2         # log(cosh(d)), cheap form
    lc_ref[0] += jnp.sum(jnp.sum(lc, axis=1, keepdims=True), axis=0, keepdims=True)
    it_ref[0] += jnp.sum(jnp.sum(sig * oh, axis=1, keepdims=True), axis=0, keepdims=True)
    ss_ref[0] += jnp.sum(jnp.sum(sig, axis=1, keepdims=True), axis=0, keepdims=True)


# ----------------------------------------------------------------------------------
# Kernel B: GapMat constant convolutions as separable shift-and-add on the zero-padded
# skeleton (pad=5, last dim lane-padded to a multiple of 128 on the host).
# ----------------------------------------------------------------------------------
def _gapmat_kernel(bp_ref, wg_ref, *, k):
    h = wg_ref.shape[1]
    w = wg_ref.shape[2]
    he, we = h + 8, w + 8

    # 3-wide row box then 3-wide column box; ring = box3 - center (8-neighbor count)
    r3 = (bp_ref[0, :, 0:we] + bp_ref[0, :, 1:1 + we] + bp_ref[0, :, 2:2 + we])  # (H+10, W+8)
    box3 = r3[0:he, :] + r3[1:1 + he, :] + r3[2:2 + he, :]                        # (H+8, W+8)
    center = bp_ref[0, 1:1 + he, 1:1 + we]                                        # (H+8, W+8)
    ring = box3 - center
    # C = where(B * conv3x3_ring(B) == 1, 1, 0) on the 4-padded extended domain
    cext = (center * ring == 1.0).astype(jnp.float32)                             # (H+8, W+8)

    # 9x9 all-ones conv, separable: 9 lane shifts then 9 sublane shifts
    r9 = cext[:, 0:w]
    for dx in range(1, 9):
        r9 = r9 + cext[:, dx:dx + w]                                              # (H+8, W)
    n9 = r9[0:h, :]
    for dy in range(1, 9):
        n9 = n9 + r9[dy:dy + h, :]                                                # (H, W)

    n9 = n9 * jnp.float32(k)                                                      # N = N * K
    wg_ref[0] = n9 + (n9 == 0.0).astype(jnp.float32)                              # W = N + (N==0)


# ----------------------------------------------------------------------------------
# Kernel C: Tversky partial sums on the broadcast (W[i] * L[j]) map.
# Grid (H-tile g, batch i) with i innermost: the shared L block (index depends only on
# g) is fetched once per H-tile; each step writes its own (Nc, W) partial-sum block,
# so every grid point is independent ("parallel", "parallel").
# ----------------------------------------------------------------------------------
def _tversky_partial_kernel(wg_ref, t_ref, l_ref, p_ref, i_ref, o_ref):
    nc, th, w = l_ref.shape
    wg = wg_ref[0]                                   # (TH, W)  GapMat weights, batch i
    t = t_ref[0]                                     # (TH, W)  int32 target, batch i
    lmat = l_ref[...]                                # (Nc, TH, W) per-pixel CE (all batches)

    logits = wg[None, :, :] * lmat                   # (W*L)[i, j, h, w] for fixed i
    m = jnp.max(logits, axis=0, keepdims=True)       # softmax over the class axis j
    e = jnp.exp(logits - m)
    probas = e * pl.reciprocal(jnp.sum(e, axis=0, keepdims=True), approx=True)

    ci = lax.broadcasted_iota(jnp.int32, (nc, th, w), 0)
    oh = (t[None, :, :] == ci).astype(jnp.float32)   # one-hot of target over j

    p_ref[0, 0] = jnp.sum(probas, axis=1)            # (Nc, W) partial sum over H-tile
    i_ref[0, 0] = jnp.sum(probas * oh, axis=1)
    o_ref[0, 0] = jnp.sum(oh, axis=1)


# ----------------------------------------------------------------------------------
# Host-side skeletonization (the reference moves argmax to .cpu().numpy() and loops).
# TODO(synk): skimage.morphology.skeletonize is not available; this is an in-script
#             Zhang-Suen thinning (skimage's default 2-D method), exact parity not guaranteed.
# ----------------------------------------------------------------------------------
def _zhang_suen_skeletonize(img):
    img = (np.asarray(img) > 0).astype(np.uint8)
    changed = True
    while changed:
        changed = False
        for step in (0, 1):
            P = np.pad(img, 1)
            p2 = P[:-2, 1:-1]; p3 = P[:-2, 2:]; p4 = P[1:-1, 2:]; p5 = P[2:, 2:]
            p6 = P[2:, 1:-1]; p7 = P[2:, :-2]; p8 = P[1:-1, :-2]; p9 = P[:-2, :-2]
            nb = [p2, p3, p4, p5, p6, p7, p8, p9]
            B = np.zeros_like(img, dtype=np.int32)
            for q in nb:
                B = B + q
            seq = nb + [p2]
            A = np.zeros_like(img, dtype=np.int32)
            for i in range(8):
                A = A + ((seq[i] == 0) & (seq[i + 1] == 1)).astype(np.int32)
            if step == 0:
                cond = ((img == 1) & (B >= 2) & (B <= 6) & (A == 1) &
                        (p2 * p4 * p6 == 0) & (p4 * p6 * p8 == 0))
            else:
                cond = ((img == 1) & (B >= 2) & (B <= 6) & (A == 1) &
                        (p2 * p4 * p8 == 0) & (p2 * p6 * p8 == 0))
            if cond.any():
                img[cond] = 0
                changed = True
    return img


# ----------------------------------------------------------------------------------
# Wrapper mirroring the PyTorch module's forward
# ----------------------------------------------------------------------------------
class AdaptiveTverskyCrossEntropyLcDiceWeightedLossPallas:
    def __init__(self, num_classes, alpha, beta, phi, cel, ftl, lcl, K=3):
        self.num_classes = num_classes
        self.alpha = alpha
        self.beta = beta
        self.phi = phi
        self.cel = cel
        self.ftl = ftl
        self.lcl = lcl
        self.K = K

    def __call__(self, pred, target):
        if self.cel + self.ftl + self.lcl != 1:
            raise ValueError('Cross Entropy weight and Tversky weight should sum to 1')
        N, C, H, W = pred.shape
        assert C == self.num_classes
        # The reference's GapMat broadcast makes tversky's class axis == batch size, and
        # eye(batch)[target] requires target values < batch size -> demo uses N == C.
        assert self.num_classes <= N, "reference semantics require class ids < batch size"
        HW = H * W
        P = N * HW

        # ---- glue: lane-dense layouts (classes on sublanes, pixels on lanes) ----
        x3 = pred.reshape(N, C, HW).astype(jnp.float32)
        t3 = target.reshape(N, H, W).astype(jnp.int32)
        tA = t3.reshape(N, 1, HW)

        # ---- Kernel A: grid (batch [parallel], pixel-tile [arbitrary]) ----
        TW = _pick_tile(HW, 4096, 128)
        GW = HW // TW
        kernel_a = pl.pallas_call(
            _pixel_stats_kernel,
            grid=(N, GW),
            in_specs=[pl.BlockSpec((1, C, TW), lambda n, g: (n, 0, g)),
                      pl.BlockSpec((1, 1, TW), lambda n, g: (n, 0, g))],
            out_specs=(pl.BlockSpec((1, 1, TW), lambda n, g: (n, 0, g)),   # L (per-pixel CE)
                       pl.BlockSpec((1, 1, TW), lambda n, g: (n, 0, g)),   # argmax map
                       pl.BlockSpec((1, C, 1), lambda n, g: (n, 0, 0)),    # class counts
                       pl.BlockSpec((1, C, 1), lambda n, g: (n, 0, 0)),    # per-class CE sums
                       pl.BlockSpec((1, 1, 1), lambda n, g: (n, 0, 0)),    # log-cosh sum
                       pl.BlockSpec((1, 1, 1), lambda n, g: (n, 0, 0)),    # dice intersection
                       pl.BlockSpec((1, 1, 1), lambda n, g: (n, 0, 0))),   # sigmoid sum
            out_shape=(jax.ShapeDtypeStruct((N, 1, HW), jnp.float32),
                       jax.ShapeDtypeStruct((N, 1, HW), jnp.int32),
                       jax.ShapeDtypeStruct((N, C, 1), jnp.float32),
                       jax.ShapeDtypeStruct((N, C, 1), jnp.float32),
                       jax.ShapeDtypeStruct((N, 1, 1), jnp.float32),
                       jax.ShapeDtypeStruct((N, 1, 1), jnp.float32),
                       jax.ShapeDtypeStruct((N, 1, 1), jnp.float32)),
            compiler_params=pltpu.CompilerParams(
                dimension_semantics=("parallel", "arbitrary")),
        )
        L_out, A_out, cnt_out, lsum_out, lc_out, it_out, ss_out = kernel_a(x3, tA)

        # ---- tiny finalize: weighted CE and lc-dice ----
        counts = jnp.sum(cnt_out[:, :, 0], axis=0)                 # (C,)
        w_cls = 1.0 - counts / jnp.float32(P)
        lsum_c = jnp.sum(lsum_out[:, :, 0], axis=0)                # (C,)
        ce = jnp.sum(w_cls * lsum_c) / jnp.sum(w_cls * counts)     # weighted CE (mean)
        log_cosh_mean = jnp.sum(lc_out) / jnp.float32(P * C)
        inter_b = it_out[:, 0, 0]                                  # (N,)
        ssum_b = ss_out[:, 0, 0]
        dice = jnp.mean(1.0 - (2.0 * inter_b + 1.0) / (ssum_b + jnp.float32(HW) + 1.0))
        lcd = 1.0 * log_cosh_mean + 1.0 * dice

        # ---- host: skeletonize argmax map per batch (as the reference does on CPU) ----
        A_np = np.asarray(jax.device_get(A_out)).reshape(N, H, W)
        pad = 5
        WP = _round_up(W + 2 * pad, 128)                           # lane-align the padded map
        B_pad = np.zeros((N, H + 2 * pad, WP), dtype=np.float32)
        for b in range(N):
            B_pad[b, pad:pad + H, pad:pad + W] = _zhang_suen_skeletonize(A_np[b])
        B_pad = jnp.asarray(B_pad)

        # ---- Kernel B: GapMat weight map W ----
        kernel_b = pl.pallas_call(
            functools.partial(_gapmat_kernel, k=self.K),
            grid=(N,),
            in_specs=[pl.BlockSpec((1, H + 2 * pad, WP), lambda n: (n, 0, 0))],
            out_specs=pl.BlockSpec((1, H, W), lambda n: (n, 0, 0)),
            out_shape=jax.ShapeDtypeStruct((N, H, W), jnp.float32),
            compiler_params=pltpu.CompilerParams(dimension_semantics=("parallel",)),
        )
        Wgap = kernel_b(B_pad)

        # ---- Kernel C: Tversky on pred_weighted[i, j, h, w] = Wgap[i,h,w] * L[j,h,w] ----
        L3 = L_out.reshape(N, H, W)
        TH = _pick_tile(H, 512, 8)
        GH = H // TH
        kernel_c = pl.pallas_call(
            _tversky_partial_kernel,
            grid=(GH, N),                                                  # i innermost
            in_specs=[pl.BlockSpec((1, TH, W), lambda g, i: (i, g, 0)),    # Wgap[i]
                      pl.BlockSpec((1, TH, W), lambda g, i: (i, g, 0)),    # target[i]
                      pl.BlockSpec((N, TH, W), lambda g, i: (0, g, 0))],   # L (shared; DMA'd
                                                                           #  once per H-tile)
            out_specs=(pl.BlockSpec((1, 1, N, W), lambda g, i: (i, g, 0, 0)),
                       pl.BlockSpec((1, 1, N, W), lambda g, i: (i, g, 0, 0)),
                       pl.BlockSpec((1, 1, N, W), lambda g, i: (i, g, 0, 0))),
            out_shape=(jax.ShapeDtypeStruct((N, GH, N, W), jnp.float32),   # sum_h probas
                       jax.ShapeDtypeStruct((N, GH, N, W), jnp.float32),   # sum_h probas*onehot
                       jax.ShapeDtypeStruct((N, GH, N, W), jnp.float32)),  # sum_h onehot
            compiler_params=pltpu.CompilerParams(
                dimension_semantics=("parallel", "parallel")),
        )
        accp, acci, acco = kernel_c(Wgap, t3, L3)

        # finish the (i, h-tile) reduction, derive fps/fns from the single big reduction
        red_p = jnp.sum(accp, axis=(0, 1))                          # (Nc, W)
        inter = jnp.sum(acci, axis=(0, 1))
        red_o = jnp.sum(acco, axis=(0, 1))
        eps = 1e-7
        ratio = inter / (inter + self.alpha * (red_p - inter)
                         + self.beta * (red_o - inter) + eps)
        score = jnp.mean(ratio)
        tv = jnp.power(jnp.maximum(1.0 - score, 0.0), jnp.float32(self.phi))

        total = self.cel * ce + self.ftl * tv + self.lcl * lcd
        return total


if __name__ == "__main__":
    key = jax.random.PRNGKey(0)
    k1, k2 = jax.random.split(key)
    N, C, H, W = 4, 4, 16, 16          # batch == num_classes (see assert in wrapper)
    pred = jax.random.normal(k1, (N, C, H, W), dtype=jnp.float32)
    target = jax.random.randint(k2, (N, 1, H, W), 0, C, dtype=jnp.int32)

    loss_mod = AdaptiveTverskyCrossEntropyLcDiceWeightedLossPallas(
        num_classes=C, alpha=0.3, beta=0.7, phi=0.75, cel=0.5, ftl=0.25, lcl=0.25, K=3)

    total = loss_mod(pred, target)
    total = jax.block_until_ready(total)
    assert np.isfinite(float(total))
    print("KERNEL_OK")
</pallas_src>

<mosaic_0001>
module attributes {stable_mosaic.version = 11 : i64} {
  func.func @_pixel_stats_kernel(%arg0: i32, %arg1: i32, %arg2: memref<1x4x256xf32, #tpu.memory_space<vmem>>, %arg3: memref<1x1x256xi32, #tpu.memory_space<vmem>>, %arg4: memref<1x1x256xf32, #tpu.memory_space<vmem>>, %arg5: memref<1x1x256xi32, #tpu.memory_space<vmem>>, %arg6: memref<1x4x1xf32, #tpu.memory_space<vmem>>, %arg7: memref<1x4x1xf32, #tpu.memory_space<vmem>>, %arg8: memref<1x1x1xf32, #tpu.memory_space<vmem>>, %arg9: memref<1x1x1xf32, #tpu.memory_space<vmem>>, %arg10: memref<1x1x1xf32, #tpu.memory_space<vmem>>) attributes {dimension_semantics = [#tpu.dimension_semantics<parallel>, #tpu.dimension_semantics<arbitrary>], iteration_bounds = array<i64: 4, 1>, scalar_prefetch = 0 : i64, scratch_operands = 0 : i64, tpu.core_type = #tpu.core_type<tc>, window_params = [{transform_indices = @transform_0, window_bounds = array<i64: 1, 4, 256>}, {transform_indices = @transform_1, window_bounds = array<i64: 1, 1, 256>}, {transform_indices = @transform_2, window_bounds = array<i64: 1, 1, 256>}, {transform_indices = @transform_3, window_bounds = array<i64: 1, 1, 256>}, {transform_indices = @transform_4, window_bounds = array<i64: 1, 4, 1>}, {transform_indices = @transform_5, window_bounds = array<i64: 1, 4, 1>}, {transform_indices = @transform_6, window_bounds = array<i64: 1, 1, 1>}, {transform_indices = @transform_7, window_bounds = array<i64: 1, 1, 1>}, {transform_indices = @transform_8, window_bounds = array<i64: 1, 1, 1>}]} {
    %c0_i32 = arith.constant 0 : i32
    %0 = arith.cmpi eq, %arg1, %c0_i32 : i32
    %1 = arith.extui %0 : i1 to i32
    %c0_i32_0 = arith.constant 0 : i32
    %2 = arith.cmpi ne, %1, %c0_i32_0 : i32
    scf.if %2 {
      %cst_59 = arith.constant 0.000000e+00 : f32
      %105 = vector.broadcast %cst_59 : f32 to vector<1x4x1xf32>
      %c0_60 = arith.constant 0 : index
      %c0_61 = arith.constant 0 : index
      %c0_62 = arith.constant 0 : index
      %106 = vector.load %arg6[%c0_60, %c0_61, %c0_62] : memref<1x4x1xf32, #tpu.memory_space<vmem>>, vector<1x4x1xf32>
      tpu.vector_store %arg6[%c0_60, %c0_61, %c0_62], %105 {strides = array<i32>} : memref<1x4x1xf32, #tpu.memory_space<vmem>>, vector<1x4x1xf32>,
      %cst_63 = arith.constant 0.000000e+00 : f32
      %107 = vector.broadcast %cst_63 : f32 to vector<1x4x1xf32>
      %c0_64 = arith.constant 0 : index
      %c0_65 = arith.constant 0 : index
      %c0_66 = arith.constant 0 : index
      %108 = vector.load %arg7[%c0_64, %c0_65, %c0_66] : memref<1x4x1xf32, #tpu.memory_space<vmem>>, vector<1x4x1xf32>
      tpu.vector_store %arg7[%c0_64, %c0_65, %c0_66], %107 {strides = array<i32>} : memref<1x4x1xf32, #tpu.memory_space<vmem>>, vector<1x4x1xf32>,
      %cst_67 = arith.constant 0.000000e+00 : f32
      %109 = vector.broadcast %cst_67 : f32 to vector<1x1x1xf32>
      %c0_68 = arith.constant 0 : index
      %c0_69 = arith.constant 0 : index
      %c0_70 = arith.constant 0 : index
      %110 = vector.load %arg8[%c0_68, %c0_69, %c0_70] : memref<1x1x1xf32, #tpu.memory_space<vmem>>, vector<1x1x1xf32>
      tpu.vector_store %arg8[%c0_68, %c0_69, %c0_70], %109 {strides = array<i32>} : memref<1x1x1xf32, #tpu.memory_space<vmem>>, vector<1x1x1xf32>,
      %cst_71 = arith.constant 0.000000e+00 : f32
      %111 = vector.broadcast %cst_71 : f32 to vector<1x1x1xf32>
      %c0_72 = arith.constant 0 : index
      %c0_73 = arith.constant 0 : index
      %c0_74 = arith.constant 0 : index
      %112 = vector.load %arg9[%c0_72, %c0_73, %c0_74] : memref<1x1x1xf32, #tpu.memory_space<vmem>>, vector<1x1x1xf32>
      tpu.vector_store %arg9[%c0_72, %c0_73, %c0_74], %111 {strides = array<i32>} : memref<1x1x1xf32, #tpu.memory_space<vmem>>, vector<1x1x1xf32>,
      %cst_75 = arith.constant 0.000000e+00 : f32
      %113 = vector.broadcast %cst_75 : f32 to vector<1x1x1xf32>
      %c0_76 = arith.constant 0 : index
      %c0_77 = arith.constant 0 : index
      %c0_78 = arith.constant 0 : index
      %114 = vector.load %arg10[%c0_76, %c0_77, %c0_78] : memref<1x1x1xf32, #tpu.memory_space<vmem>>, vector<1x1x1xf32>
      tpu.vector_store %arg10[%c0_76, %c0_77, %c0_78], %113 {strides = array<i32>} : memref<1x1x1xf32, #tpu.memory_space<vmem>>, vector<1x1x1xf32>,
    } else {
    }
    %c0 = arith.constant 0 : index
    %c0_1 = arith.constant 0 : index
    %c0_2 = arith.constant 0 : index
    %3 = vector.load %arg2[%c0, %c0_1, %c0_2] : memref<1x4x256xf32, #tpu.memory_space<vmem>>, vector<1x4x256xf32>
    %4 = vector.shape_cast %3 : vector<1x4x256xf32> to vector<4x256xf32>
    %c0_3 = arith.constant 0 : index
    %c0_4 = arith.constant 0 : index
    %c0_5 = arith.constant 0 : index
    %5 = vector.load %arg3[%c0_3, %c0_4, %c0_5] : memref<1x1x256xi32, #tpu.memory_space<vmem>>, vector<1x1x256xi32>
    %6 = vector.shape_cast %5 : vector<1x1x256xi32> to vector<1x256xi32>
    %7 = tpu.iota {dimensions = array<i32: 0>} : vector<4x256xi32>
    %8 = vector.broadcast %6 : vector<1x256xi32> to vector<4x256xi32>
    %9 = arith.cmpi eq, %8, %7 : vector<4x256xi32>
    %10 = arith.extui %9 : vector<4x256xi1> to vector<4x256xi32>
    %11 = arith.sitofp %10 : vector<4x256xi32> to vector<4x256xf32>
    %cst = arith.constant dense<0xFF800000> : vector<256xf32>
    %12 = vector.multi_reduction <maximumf>, %4, %cst [0] : vector<4x256xf32> to vector<256xf32>
    %13 = vector.shape_cast %12 : vector<256xf32> to vector<1x256xf32>
    %14 = vector.broadcast %13 : vector<1x256xf32> to vector<4x256xf32>
    %15 = arith.subf %4, %14 : vector<4x256xf32>
    %16 = math.exp %15 : vector<4x256xf32>
    %cst_6 = arith.constant dense<0.000000e+00> : vector<256xf32>
    %17 = vector.multi_reduction <add>, %16, %cst_6 [0] : vector<4x256xf32> to vector<256xf32>
    %18 = vector.shape_cast %17 : vector<256xf32> to vector<1x256xf32>
    %19 = math.log %18 : vector<1x256xf32>
    %20 = arith.addf %19, %13 : vector<1x256xf32>
    %21 = arith.mulf %4, %11 : vector<4x256xf32>
    %cst_7 = arith.constant dense<0.000000e+00> : vector<256xf32>
    %22 = vector.multi_reduction <add>, %21, %cst_7 [0] : vector<4x256xf32> to vector<256xf32>
    %23 = vector.shape_cast %22 : vector<256xf32> to vector<1x256xf32>
    %24 = arith.subf %20, %23 : vector<1x256xf32>
    %c0_8 = arith.constant 0 : index
    %c0_9 = arith.constant 0 : index
    %c0_10 = arith.constant 0 : index
    %25 = vector.load %arg4[%c0_8, %c0_9, %c0_10] : memref<1x1x256xf32, #tpu.memory_space<vmem>>, vector<1x1x256xf32>
    %26 = vector.shape_cast %25 : vector<1x1x256xf32> to vector<1x256xf32>
    %27 = vector.shape_cast %24 : vector<1x256xf32> to vector<1x1x256xf32>
    tpu.vector_store %arg4[%c0_8, %c0_9, %c0_10], %27 {strides = array<i32>} : memref<1x1x256xf32, #tpu.memory_space<vmem>>, vector<1x1x256xf32>,
    %28 = vector.broadcast %13 : vector<1x256xf32> to vector<4x256xf32>
    %29 = arith.cmpf oge, %4, %28 : vector<4x256xf32>
    %30 = arith.sitofp %7 : vector<4x256xi32> to vector<4x256xf32>
    %cst_11 = arith.constant 4.000000e+00 : f32
    %31 = vector.broadcast %cst_11 : f32 to vector<4x256xf32>
    %32 = arith.select %29, %30, %31 : vector<4x256xi1>, vector<4x256xf32>
    %cst_12 = arith.constant dense<0x7F800000> : vector<256xf32>
    %33 = vector.multi_reduction <minimumf>, %32, %cst_12 [0] : vector<4x256xf32> to vector<256xf32>
    %34 = vector.shape_cast %33 : vector<256xf32> to vector<1x256xf32>
    %35 = arith.fptosi %34 : vector<1x256xf32> to vector<1x256xi32>
    %c0_13 = arith.constant 0 : index
    %c0_14 = arith.constant 0 : index
    %c0_15 = arith.constant 0 : index
    %36 = vector.load %arg5[%c0_13, %c0_14, %c0_15] : memref<1x1x256xi32, #tpu.memory_space<vmem>>, vector<1x1x256xi32>
    %37 = vector.shape_cast %36 : vector<1x1x256xi32> to vector<1x256xi32>
    %38 = vector.shape_cast %35 : vector<1x256xi32> to vector<1x1x256xi32>
    tpu.vector_store %arg5[%c0_13, %c0_14, %c0_15], %38 {strides = array<i32>} : memref<1x1x256xi32, #tpu.memory_space<vmem>>, vector<1x1x256xi32>,
    %c0_16 = arith.constant 0 : index
    %c0_17 = arith.constant 0 : index
    %c0_18 = arith.constant 0 : index
    %39 = vector.load %arg6[%c0_16, %c0_17, %c0_18] : memref<1x4x1xf32, #tpu.memory_space<vmem>>, vector<1x4x1xf32>
    %40 = vector.shape_cast %39 : vector<1x4x1xf32> to vector<4x1xf32>
    %cst_19 = arith.constant dense<0.000000e+00> : vector<4xf32>
    %41 = vector.multi_reduction <add>, %11, %cst_19 [1] : vector<4x256xf32> to vector<4xf32>
    %42 = vector.shape_cast %41 : vector<4xf32> to vector<4x1xf32>
    %43 = arith.addf %40, %42 : vector<4x1xf32>
    %c0_20 = arith.constant 0 : index
    %c0_21 = arith.constant 0 : index
    %c0_22 = arith.constant 0 : index
    %44 = vector.load %arg6[%c0_20, %c0_21, %c0_22] : memref<1x4x1xf32, #tpu.memory_space<vmem>>, vector<1x4x1xf32>
    %45 = vector.shape_cast %44 : vector<1x4x1xf32> to vector<4x1xf32>
    %46 = vector.shape_cast %43 : vector<4x1xf32> to vector<1x4x1xf32>
    tpu.vector_store %arg6[%c0_20, %c0_21, %c0_22], %46 {strides = array<i32>} : memref<1x4x1xf32, #tpu.memory_space<vmem>>, vector<1x4x1xf32>,
    %c0_23 = arith.constant 0 : index
    %c0_24 = arith.constant 0 : index
    %c0_25 = arith.constant 0 : index
    %47 = vector.load %arg7[%c0_23, %c0_24, %c0_25] : memref<1x4x1xf32, #tpu.memory_space<vmem>>, vector<1x4x1xf32>
    %48 = vector.shape_cast %47 : vector<1x4x1xf32> to vector<4x1xf32>
    %49 = vector.broadcast %24 : vector<1x256xf32> to vector<4x256xf32>
    %50 = arith.mulf %11, %49 : vector<4x256xf32>
    %cst_26 = arith.constant dense<0.000000e+00> : vector<4xf32>
    %51 = vector.multi_reduction <add>, %50, %cst_26 [1] : vector<4x256xf32> to vector<4xf32>
    %52 = vector.shape_cast %51 : vector<4xf32> to vector<4x1xf32>
    %53 = arith.addf %48, %52 : vector<4x1xf32>
    %c0_27 = arith.constant 0 : index
    %c0_28 = arith.constant 0 : index
    %c0_29 = arith.constant 0 : index
    %54 = vector.load %arg7[%c0_27, %c0_28, %c0_29] : memref<1x4x1xf32, #tpu.memory_space<vmem>>, vector<1x4x1xf32>
    %55 = vector.shape_cast %54 : vector<1x4x1xf32> to vector<4x1xf32>
    %56 = vector.shape_cast %53 : vector<4x1xf32> to vector<1x4x1xf32>
    tpu.vector_store %arg7[%c0_27, %c0_28, %c0_29], %56 {strides = array<i32>} : memref<1x4x1xf32, #tpu.memory_space<vmem>>, vector<1x4x1xf32>,
    %cst_30 = arith.constant 0.000000e+00 : f32
    %57 = vector.broadcast %cst_30 : f32 to vector<4x256xf32>
    %58 = arith.subf %57, %4 : vector<4x256xf32>
    %59 = math.exp %58 : vector<4x256xf32>
    %cst_31 = arith.constant 1.000000e+00 : f32
    %60 = vector.broadcast %cst_31 : f32 to vector<4x256xf32>
    %61 = arith.addf %60, %59 : vector<4x256xf32>
    %62 = tpu.reciprocal %61 {approx = true} : vector<4x256xf32> -> vector<4x256xf32>
    %63 = arith.subf %62, %11 : vector<4x256xf32>
    %64 = math.absf %63 : vector<4x256xf32>
    %cst_32 = arith.constant -2.000000e+00 : f32
    %65 = vector.broadcast %cst_32 : f32 to vector<4x256xf32>
    %66 = arith.mulf %65, %64 : vector<4x256xf32>
    %67 = math.exp %66 : vector<4x256xf32>
    %cst_33 = arith.constant 1.000000e+00 : f32
    %68 = vector.broadcast %cst_33 : f32 to vector<4x256xf32>
    %69 = arith.addf %68, %67 : vector<4x256xf32>
    %70 = math.log %69 : vector<4x256xf32>
    %71 = arith.addf %64, %70 : vector<4x256xf32>
    %cst_34 = arith.constant 0.693147182 : f32
    %72 = vector.broadcast %cst_34 : f32 to vector<4x256xf32>
    %73 = arith.subf %71, %72 : vector<4x256xf32>
    %c0_35 = arith.constant 0 : index
    %c0_36 = arith.constant 0 : index
    %c0_37 = arith.constant 0 : index
    %74 = vector.load %arg8[%c0_35, %c0_36, %c0_37] : memref<1x1x1xf32, #tpu.memory_space<vmem>>, vector<1x1x1xf32>
    %75 = vector.shape_cast %74 : vector<1x1x1xf32> to vector<1x1xf32>
    %cst_38 = arith.constant dense<0.000000e+00> : vector<4xf32>
    %76 = vector.multi_reduction <add>, %73, %cst_38 [1] : vector<4x256xf32> to vector<4xf32>
    %77 = vector.shape_cast %76 : vector<4xf32> to vector<4x1xf32>
    %cst_39 = arith.constant dense<0.000000e+00> : vector<1xf32>
    %78 = vector.multi_reduction <add>, %77, %cst_39 [0] : vector<4x1xf32> to vector<1xf32>
    %79 = vector.shape_cast %78 : vector<1xf32> to vector<1x1xf32>
    %80 = arith.addf %75, %79 : vector<1x1xf32>
    %c0_40 = arith.constant 0 : index
    %c0_41 = arith.constant 0 : index
    %c0_42 = arith.constant 0 : index
    %81 = vector.load %arg8[%c0_40, %c0_41, %c0_42] : memref<1x1x1xf32, #tpu.memory_space<vmem>>, vector<1x1x1xf32>
    %82 = vector.shape_cast %81 : vector<1x1x1xf32> to vector<1x1xf32>
    %83 = vector.shape_cast %80 : vector<1x1xf32> to vector<1x1x1xf32>
    tpu.vector_store %arg8[%c0_40, %c0_41, %c0_42], %83 {strides = array<i32>} : memref<1x1x1xf32, #tpu.memory_space<vmem>>, vector<1x1x1xf32>,
    %c0_43 = arith.constant 0 : index
    %c0_44 = arith.constant 0 : index
    %c0_45 = arith.constant 0 : index
    %84 = vector.load %arg9[%c0_43, %c0_44, %c0_45] : memref<1x1x1xf32, #tpu.memory_space<vmem>>, vector<1x1x1xf32>
    %85 = vector.shape_cast %84 : vector<1x1x1xf32> to vector<1x1xf32>
    %86 = arith.mulf %62, %11 : vector<4x256xf32>
    %cst_46 = arith.constant dense<0.000000e+00> : vector<4xf32>
    %87 = vector.multi_reduction <add>, %86, %cst_46 [1] : vector<4x256xf32> to vector<4xf32>
    %88 = vector.shape_cast %87 : vector<4xf32> to vector<4x1xf32>
    %cst_47 = arith.constant dense<0.000000e+00> : vector<1xf32>
    %89 = vector.multi_reduction <add>, %88, %cst_47 [0] : vector<4x1xf32> to vector<1xf32>
    %90 = vector.shape_cast %89 : vector<1xf32> to vector<1x1xf32>
    %91 = arith.addf %85, %90 : vector<1x1xf32>
    %c0_48 = arith.constant 0 : index
    %c0_49 = arith.constant 0 : index
    %c0_50 = arith.constant 0 : index
    %92 = vector.load %arg9[%c0_48, %c0_49, %c0_50] : memref<1x1x1xf32, #tpu.memory_space<vmem>>, vector<1x1x1xf32>
    %93 = vector.shape_cast %92 : vector<1x1x1xf32> to vector<1x1xf32>
    %94 = vector.shape_cast %91 : vector<1x1xf32> to vector<1x1x1xf32>
    tpu.vector_store %arg9[%c0_48, %c0_49, %c0_50], %94 {strides = array<i32>} : memref<1x1x1xf32, #tpu.memory_space<vmem>>, vector<1x1x1xf32>,
    %c0_51 = arith.constant 0 : index
    %c0_52 = arith.constant 0 : index
    %c0_53 = arith.constant 0 : index
    %95 = vector.load %arg10[%c0_51, %c0_52, %c0_53] : memref<1x1x1xf32, #tpu.memory_space<vmem>>, vector<1x1x1xf32>
    %96 = vector.shape_cast %95 : vector<1x1x1xf32> to vector<1x1xf32>
    %cst_54 = arith.constant dense<0.000000e+00> : vector<4xf32>
    %97 = vector.multi_reduction <add>, %62, %cst_54 [1] : vector<4x256xf32> to vector<4xf32>
    %98 = vector.shape_cast %97 : vector<4xf32> to vector<4x1xf32>
    %cst_55 = arith.constant dense<0.000000e+00> : vector<1xf32>
    %99 = vector.multi_reduction <add>, %98, %cst_55 [0] : vector<4x1xf32> to vector<1xf32>
    %100 = vector.shape_cast %99 : vector<1xf32> to vector<1x1xf32>
    %101 = arith.addf %96, %100 : vector<1x1xf32>
    %c0_56 = arith.constant 0 : index
    %c0_57 = arith.constant 0 : index
    %c0_58 = arith.constant 0 : index
    %102 = vector.load %arg10[%c0_56, %c0_57, %c0_58] : memref<1x1x1xf32, #tpu.memory_space<vmem>>, vector<1x1x1xf32>
    %103 = vector.shape_cast %102 : vector<1x1x1xf32> to vector<1x1xf32>
    %104 = vector.shape_cast %101 : vector<1x1xf32> to vector<1x1x1xf32>
    tpu.vector_store %arg10[%c0_56, %c0_57, %c0_58], %104 {strides = array<i32>} : memref<1x1x1xf32, #tpu.memory_space<vmem>>, vector<1x1x1xf32>,
    return
  }
  func.func @transform_0(%arg0: i32, %arg1: i32) -> (i32, i32, i32) {
    %c0_i32 = arith.constant 0 : i32
    %c0_i32_0 = arith.constant 0 : i32
    return %arg0, %c0_i32, %arg1 : i32, i32, i32
  }
  func.func @transform_1(%arg0: i32, %arg1: i32) -> (i32, i32, i32) {
    %c0_i32 = arith.constant 0 : i32
    %c0_i32_0 = arith.constant 0 : i32
    return %arg0, %c0_i32, %arg1 : i32, i32, i32
  }
  func.func @transform_2(%arg0: i32, %arg1: i32) -> (i32, i32, i32) {
    %c0_i32 = arith.constant 0 : i32
    %c0_i32_0 = arith.constant 0 : i32
    return %arg0, %c0_i32, %arg1 : i32, i32, i32
  }
  func.func @transform_3(%arg0: i32, %arg1: i32) -> (i32, i32, i32) {
    %c0_i32 = arith.constant 0 : i32
    %c0_i32_0 = arith.constant 0 : i32
    return %arg0, %c0_i32, %arg1 : i32, i32, i32
  }
  func.func @transform_4(%arg0: i32, %arg1: i32) -> (i32, i32, i32) {
    %c0_i32 = arith.constant 0 : i32
    %c0_i32_0 = arith.constant 0 : i32
    %c0_i32_1 = arith.constant 0 : i32
    return %arg0, %c0_i32, %c0_i32_0 : i32, i32, i32
  }
  func.func @transform_5(%arg0: i32, %arg1: i32) -> (i32, i32, i32) {
    %c0_i32 = arith.constant 0 : i32
    %c0_i32_0 = arith.constant 0 : i32
    %c0_i32_1 = arith.constant 0 : i32
    return %arg0, %c0_i32, %c0_i32_0 : i32, i32, i32
  }
  func.func @transform_6(%arg0: i32, %arg1: i32) -> (i32, i32, i32) {
    %c0_i32 = arith.constant 0 : i32
    %c0_i32_0 = arith.constant 0 : i32
    %c0_i32_1 = arith.constant 0 : i32
    return %arg0, %c0_i32, %c0_i32_0 : i32, i32, i32
  }
  func.func @transform_7(%arg0: i32, %arg1: i32) -> (i32, i32, i32) {
    %c0_i32 = arith.constant 0 : i32
    %c0_i32_0 = arith.constant 0 : i32
    %c0_i32_1 = arith.constant 0 : i32
    return %arg0, %c0_i32, %c0_i32_0 : i32, i32, i32
  }
  func.func @transform_8(%arg0: i32, %arg1: i32) -> (i32, i32, i32) {
    %c0_i32 = arith.constant 0 : i32
    %c0_i32_0 = arith.constant 0 : i32
    %c0_i32_1 = arith.constant 0 : i32
    return %arg0, %c0_i32, %c0_i32_0 : i32, i32, i32
  }
}

</mosaic_0001>

<llo_original>
// kernel: tpu_custom_call.1
$region0: #{tpu_custom_call.1}
  #allocation0 [shape = 'u32[]', space=smem, size = 0x4, offset = 0x4, fixed_abs, tag = 'smem constant byte address 0x4 - core index']
  #allocation1 [shape = 'u32[144,128]{1,0:T(1,128)}', space=vmem, size = 0x12000, scoped, tag = 'internal scratch']
  %s0 = inlined_call_operand.hbm [shape: f32[4,4,256], index: 0, kind: input, shape index: {}]
  %s1 = inlined_call_operand.hbm [shape: s32[4,1,256], index: 1, kind: input, shape index: {}]
  %s2 = inlined_call_operand.hbm [shape: f32[4,1,256], index: 2, kind: output, shape index: {0}]
  %s3 = inlined_call_operand.hbm [shape: s32[4,1,256], index: 3, kind: output, shape index: {1}]
  %s4 = inlined_call_operand.vmem [shape: f32[4,4,1], index: 4, kind: output, shape index: {2}]
  %s5 = inlined_call_operand.vmem [shape: f32[4,4,1], index: 5, kind: output, shape index: {3}]
  %s6 = inlined_call_operand.vmem [shape: f32[4,1,1], index: 6, kind: output, shape index: {4}]
  %s7 = inlined_call_operand.vmem [shape: f32[4,1,1], index: 7, kind: output, shape index: {5}]
  %s8 = inlined_call_operand.vmem [shape: f32[4,1,1], index: 8, kind: output, shape index: {6}]
  %9 = xla_tuple %s2, %s3, %s4, %s5, %s6, %s7, %s8
  %s10 = sld [smem:[#allocation0]]
  $region101: #{tpu_custom_call.1} parent=0
    _
  %s12 = ssub.s32 1, %s10
  %s13 = scalar_select 0, %s12, %s10
  $region1: #{tpu_custom_call.1} parent=0
    #allocation2 [shape = 'u8[8192]{0}', space=vmem, size = 0x2000, scoped, tag = 'input window, operand 0']
    #allocation3 [shape = 's32[2]{0}', space=sflag, size = 0x8, scoped, tag = 'scoped memory for tpu_custom_call.1']
    #allocation4 [shape = 's32[2]{0}', space=sflag, size = 0x8, scoped, tag = 'scoped memory for tpu_custom_call.1']
    #allocation5 [shape = 'u8[2048]{0}', space=vmem, size = 0x800, scoped, tag = 'input window, operand 1']
    #allocation6 [shape = 's32[2]{0}', space=sflag, size = 0x8, scoped, tag = 'scoped memory for tpu_custom_call.1']
    #allocation7 [shape = 'u8[2048]{0}', space=vmem, size = 0x800, scoped, tag = 'output window, operand 0']
    #allocation8 [shape = 'u8[2048]{0}', space=vmem, size = 0x800, scoped, tag = 'output window, operand 1']
    #allocation9 [shape = 's32[2]{0}', space=sflag, size = 0x8, scoped, tag = 'scoped memory for tpu_custom_call.1']
    %14 = vsyncpa [#allocation3], 0
    %s15 = scalar_lea.sflag [#allocation3], 1
    %16 = vsyncpa %s15, 0
    %17 = vsyncpa [#allocation6], 0
    %s18 = scalar_lea.sflag [#allocation6], 1
    %19 = vsyncpa %s18, 0
    %20 = vsyncpa [#allocation4], 0
    %s21 = scalar_lea.sflag [#allocation4], 1
    %22 = vsyncpa %s21, 0
    %23 = vsyncpa [#allocation9], 0
    %s24 = scalar_lea.sflag [#allocation9], 1
    %25 = vsyncpa %s24, 0
    loop: start=0, step=1, limit=6
    $region2: #{tpu_custom_call.1} parent=1 // loop_pre_header
      _
    $region3: #{tpu_custom_call.1} parent=1 // loop_header
      %s27 = sphi 0, %s31
      %p28 = scmp.ge.s32.totalorder %s27, 6
      %s34 = sphi 0, %s46
      %s35 = sphi 0, %s42
      %s36 = sphi 0, %s34
      %s37 = sphi 0, %s35
      %s38 = sphi 0, %s36
      %s39 = sphi 0, %s37
      %s51 = sphi 0, %s53
      %s54 = sphi 0, %s51
      %s55 = sphi 0, %s54
      %s71 = sphi 0, %s55
      %s79 = sphi 0, %s81
      %s82 = sphi 0, %s79
      %s83 = sphi 0, %s82
      %s99 = sphi 0, %s83
      %s107 = sphi 0, %s109
      %s110 = sphi 0, %s107
      %s111 = sphi 0, %s110
      %s127 = sphi 0, %s111
      %s135 = sphi 0, %s137
      %s138 = sphi 0, %s135
      %s139 = sphi 0, %s138
      %s155 = sphi 0, %s139
      %s161 = sphi 0, %s163
      %s164 = sphi 0, %s161
      %s165 = sphi 0, %s164
      %s181 = sphi 0, %s165
      %s187 = sphi 0, %s189
      %s190 = sphi 0, %s187
      %s191 = sphi 0, %s190
      %s207 = sphi 0, %s191
      %s213 = sphi 0, %s215
      %s216 = sphi 0, %s213
      %s217 = sphi 0, %s216
      %s233 = sphi 0, %s217
      %s239 = sphi 0, %s241
      %s242 = sphi 0, %s239
      %s243 = sphi 0, %s242
      %s259 = sphi 0, %s243
      %s265 = sphi 0, %s267
      %s268 = sphi 0, %s265
      %s269 = sphi 0, %s268
      %s285 = sphi 0, %s269
    $region4: #{tpu_custom_call.1} parent=1 // loop_header_branch
      %30 = sbr.rel (%p28) target = $region8
    $region5: #{tpu_custom_call.1} parent=1 // loop_body
      %s32 = ssub.s32 %s27, 1
      %s33 = ssub.s32 %s27, 2
      %s40 = sadd.s32 1, %s35
      %p41 = scmp.ge.s32.totalorder %s40, 1
      %s42 = scalar_select %p41, 0, %s40
      %s43 = sadd.s32 1, %s34
      %s44 = scalar_select %p41, %s43, %s34
      %p45 = scmp.ge.s32.totalorder %s44, 4
      %s46 = scalar_select %p45, 0, %s44
      %s47 = ssub.s32 %s34, %s46
      %s48 = ssub.s32 %s35, %s42
      %s49 = sor.u32 %s47, %s48
      %p50 = scmp.eq.s32.totalorder %s49, 0
      %s52 = sadd.s32 %s51, 1
      %s53 = scalar_select %p50, %s51, %s52
      %p56 = pneg %p50
      %p57 = scmp.eq.s32.totalorder %s27, 3
      %p58 = por %p56, %p57
      %p59 = scmp.ne.s32.totalorder %s51, %s54
      %p60 = scmp.eq.s32.totalorder %s27, 0
      %p61 = por %p59, %p60
      %p62 = scmp.ne.s32.totalorder %s51, %s54
      %p63 = scmp.eq.s32.totalorder %s32, 3
      %p64 = por %p62, %p63
      %p65 = scmp.ne.s32.totalorder %s54, %s55
      %p66 = scmp.eq.s32.totalorder %s32, 0
      %p67 = por %p65, %p66
      %p68 = scmp.ne.s32.totalorder %s54, %s55
      %p69 = scmp.eq.s32.totalorder %s33, 3
      %p70 = por %p68, %p69
      %p72 = scmp.ne.s32.totalorder %s55, %s71
      %p73 = scmp.eq.s32.totalorder %s33, 0
      %p74 = por %p72, %p73
      %s75 = ssub.s32 %s34, %s46
      %s76 = ssub.s32 %s35, %s42
      %s77 = sor.u32 %s75, %s76
      %p78 = scmp.eq.s32.totalorder %s77, 0
      %s80 = sadd.s32 %s79, 1
      %s81 = scalar_select %p78, %s79, %s80
      %p84 = pneg %p78
      %p85 = scmp.eq.s32.totalorder %s27, 3
      %p86 = por %p84, %p85
      %p87 = scmp.ne.s32.totalorder %s79, %s82
      %p88 = scmp.eq.s32.totalorder %s27, 0
      %p89 = por %p87, %p88
      %p90 = scmp.ne.s32.totalorder %s79, %s82
      %p91 = scmp.eq.s32.totalorder %s32, 3
      %p92 = por %p90, %p91
      %p93 = scmp.ne.s32.totalorder %s82, %s83
      %p94 = scmp.eq.s32.totalorder %s32, 0
      %p95 = por %p93, %p94
      %p96 = scmp.ne.s32.totalorder %s82, %s83
      %p97 = scmp.eq.s32.totalorder %s33, 3
      %p98 = por %p96, %p97
      %p100 = scmp.ne.s32.totalorder %s83, %s99
      %p101 = scmp.eq.s32.totalorder %s33, 0
      %p102 = por %p100, %p101
      %s103 = ssub.s32 %s34, %s46
      %s104 = ssub.s32 %s35, %s42
      %s105 = sor.u32 %s103, %s104
      %p106 = scmp.eq.s32.totalorder %s105, 0
      %s108 = sadd.s32 %s107, 1
      %s109 = scalar_select %p106, %s107, %s108
      %p112 = pneg %p106
      %p113 = scmp.eq.s32.totalorder %s27, 3
      %p114 = por %p112, %p113
      %p115 = scmp.ne.s32.totalorder %s107, %s110
      %p116 = scmp.eq.s32.totalorder %s27, 0
      %p117 = por %p115, %p116
      %p118 = scmp.ne.s32.totalorder %s107, %s110
      %p119 = scmp.eq.s32.totalorder %s32, 3
      %p120 = por %p118, %p119
      %p121 = scmp.ne.s32.totalorder %s110, %s111
      %p122 = scmp.eq.s32.totalorder %s32, 0
      %p123 = por %p121, %p122
      %p124 = scmp.ne.s32.totalorder %s110, %s111
      %p125 = scmp.eq.s32.totalorder %s33, 3
      %p126 = por %p124, %p125
      %p128 = scmp.ne.s32.totalorder %s111, %s127
      %p129 = scmp.eq.s32.totalorder %s33, 0
      %p130 = por %p128, %p129
      %s131 = ssub.s32 %s34, %s46
      %s132 = ssub.s32 %s35, %s42
      %s133 = sor.u32 %s131, %s132
      %p134 = scmp.eq.s32.totalorder %s133, 0
      %s136 = sadd.s32 %s135, 1
      %s137 = scalar_select %p134, %s135, %s136
      %p140 = pneg %p134
      %p141 = scmp.eq.s32.totalorder %s27, 3
      %p142 = por %p140, %p141
      %p143 = scmp.ne.s32.totalorder %s135, %s138
      %p144 = scmp.eq.s32.totalorder %s27, 0
      %p145 = por %p143, %p144
      %p146 = scmp.ne.s32.totalorder %s135, %s138
      %p147 = scmp.eq.s32.totalorder %s32, 3
      %p148 = por %p146, %p147
      %p149 = scmp.ne.s32.totalorder %s138, %s139
      %p150 = scmp.eq.s32.totalorder %s32, 0
      %p151 = por %p149, %p150
      %p152 = scmp.ne.s32.totalorder %s138, %s139
      %p153 = scmp.eq.s32.totalorder %s33, 3
      %p154 = por %p152, %p153
      %p156 = scmp.ne.s32.totalorder %s139, %s155
      %p157 = scmp.eq.s32.totalorder %s33, 0
      %p158 = por %p156, %p157
      %s159 = ssub.s32 %s34, %s46
      %p160 = scmp.eq.s32.totalorder %s159, 0
      %s162 = sadd.s32 %s161, 1
      %s163 = scalar_select %p160, %s161, %s162
      %p166 = pneg %p160
      %p167 = scmp.eq.s32.totalorder %s27, 3
      %p168 = por %p166, %p167
      %p169 = scmp.ne.s32.totalorder %s161, %s164
      %p170 = scmp.eq.s32.totalorder %s27, 0
      %p171 = por %p169, %p170
      %p172 = scmp.ne.s32.totalorder %s161, %s164
      %p173 = scmp.eq.s32.totalorder %s32, 3
      %p174 = por %p172, %p173
      %p175 = scmp.ne.s32.totalorder %s164, %s165
      %p176 = scmp.eq.s32.totalorder %s32, 0
      %p177 = por %p175, %p176
      %p178 = scmp.ne.s32.totalorder %s164, %s165
      %p179 = scmp.eq.s32.totalorder %s33, 3
      %p180 = por %p178, %p179
      %p182 = scmp.ne.s32.totalorder %s165, %s181
      %p183 = scmp.eq.s32.totalorder %s33, 0
      %p184 = por %p182, %p183
      %s185 = ssub.s32 %s34, %s46
      %p186 = scmp.eq.s32.totalorder %s185, 0
      %s188 = sadd.s32 %s187, 1
      %s189 = scalar_select %p186, %s187, %s188
      %p192 = pneg %p186
      %p193 = scmp.eq.s32.totalorder %s27, 3
      %p194 = por %p192, %p193
      %p195 = scmp.ne.s32.totalorder %s187, %s190
      %p196 = scmp.eq.s32.totalorder %s27, 0
      %p197 = por %p195, %p196
      %p198 = scmp.ne.s32.totalorder %s187, %s190
      %p199 = scmp.eq.s32.totalorder %s32, 3
      %p200 = por %p198, %p199
      %p201 = scmp.ne.s32.totalorder %s190, %s191
      %p202 = scmp.eq.s32.totalorder %s32, 0
      %p203 = por %p201, %p202
      %p204 = scmp.ne.s32.totalorder %s190, %s191
      %p205 = scmp.eq.s32.totalorder %s33, 3
      %p206 = por %p204, %p205
      %p208 = scmp.ne.s32.totalorder %s191, %s207
      %p209 = scmp.eq.s32.totalorder %s33, 0
      %p210 = por %p208, %p209
      %s211 = ssub.s32 %s34, %s46
      %p212 = scmp.eq.s32.totalorder %s211, 0
      %s214 = sadd.s32 %s213, 1
      %s215 = scalar_select %p212, %s213, %s214
      %p218 = pneg %p212
      %p219 = scmp.eq.s32.totalorder %s27, 3
      %p220 = por %p218, %p219
      %p221 = scmp.ne.s32.totalorder %s213, %s216
      %p222 = scmp.eq.s32.totalorder %s27, 0
      %p223 = por %p221, %p222
      %p224 = scmp.ne.s32.totalorder %s213, %s216
      %p225 = scmp.eq.s32.totalorder %s32, 3
      %p226 = por %p224, %p225
      %p227 = scmp.ne.s32.totalorder %s216, %s217
      %p228 = scmp.eq.s32.totalorder %s32, 0
      %p229 = por %p227, %p228
      %p230 = scmp.ne.s32.totalorder %s216, %s217
      %p231 = scmp.eq.s32.totalorder %s33, 3
      %p232 = por %p230, %p231
      %p234 = scmp.ne.s32.totalorder %s217, %s233
      %p235 = scmp.eq.s32.totalorder %s33, 0
      %p236 = por %p234, %p235
      %s237 = ssub.s32 %s34, %s46
      %p238 = scmp.eq.s32.totalorder %s237, 0
      %s240 = sadd.s32 %s239, 1
      %s241 = scalar_select %p238, %s239, %s240
      %p244 = pneg %p238
      %p245 = scmp.eq.s32.totalorder %s27, 3
      %p246 = por %p244, %p245
      %p247 = scmp.ne.s32.totalorder %s239, %s242
      %p248 = scmp.eq.s32.totalorder %s27, 0
      %p249 = por %p247, %p248
      %p250 = scmp.ne.s32.totalorder %s239, %s242
      %p251 = scmp.eq.s32.totalorder %s32, 3
      %p252 = por %p250, %p251
      %p253 = scmp.ne.s32.totalorder %s242, %s243
      %p254 = scmp.eq.s32.totalorder %s32, 0
      %p255 = por %p253, %p254
      %p256 = scmp.ne.s32.totalorder %s242, %s243
      %p257 = scmp.eq.s32.totalorder %s33, 3
      %p258 = por %p256, %p257
      %p260 = scmp.ne.s32.totalorder %s243, %s259
      %p261 = scmp.eq.s32.totalorder %s33, 0
      %p262 = por %p260, %p261
      %s263 = ssub.s32 %s34, %s46
      %p264 = scmp.eq.s32.totalorder %s263, 0
      %s266 = sadd.s32 %s265, 1
      %s267 = scalar_select %p264, %s265, %s266
      %p270 = pneg %p264
      %p271 = scmp.eq.s32.totalorder %s27, 3
      %p272 = por %p270, %p271
      %p273 = scmp.ne.s32.totalorder %s265, %s268
      %p274 = scmp.eq.s32.totalorder %s27, 0
      %p275 = por %p273, %p274
      %p276 = scmp.ne.s32.totalorder %s265, %s268
      %p277 = scmp.eq.s32.totalorder %s32, 3
      %p278 = por %p276, %p277
      %p279 = scmp.ne.s32.totalorder %s268, %s269
      %p280 = scmp.eq.s32.totalorder %s32, 0
      %p281 = por %p279, %p280
      %p282 = scmp.ne.s32.totalorder %s268, %s269
      %p283 = scmp.eq.s32.totalorder %s33, 3
      %p284 = por %p282, %p283
      %p286 = scmp.ne.s32.totalorder %s269, %s285
      %p287 = scmp.eq.s32.totalorder %s33, 0
      %p288 = por %p286, %p287
      %p289 = scmp.le.s32.totalorder 1, %s27
      %p290 = scmp.lt.s32.totalorder %s27, 5
      %p291 = pnand %p289, %p290
      %p292 = pneg %p291
      // Predicated region
      $region9: #{tpu_custom_call.1} parent=5 // pred_check
        _
      $region10: #{tpu_custom_call.1} parent=5 // pred_check_branch
        %294 = sbr.rel (%p291) target = $region12
      $region11: #{tpu_custom_call.1} parent=5 // pred_region
        %s295 = ssub.s32 %s27, 1
      $region12: #{tpu_custom_call.1} parent=5 // pred_fallthru
        _
      %p296 = scmp.lt.s32.totalorder %s27, 4
      // Predicated region
      $region13: #{tpu_custom_call.1} parent=5 // pred_check
        %p297 = pneg %p296
      $region14: #{tpu_custom_call.1} parent=5 // pred_check_branch
        %299 = sbr.rel (%p297) target = $region16
      $region15: #{tpu_custom_call.1} parent=5 // pred_region
        // Predicated region
        $region17: #{tpu_custom_call.1} parent=15 // pred_check
          %p300 = pneg %p61
        $region18: #{tpu_custom_call.1} parent=15 // pred_check_branch
          %302 = sbr.rel (%p300) target = $region20
        $region19: #{tpu_custom_call.1} parent=15 // pred_region
          %s303 = sand.u32 %s51, 1
          %s304 = scalar_lea.sflag [#allocation3], %s303
          %s305 = sand.u32 %s51, 1
          %s306 = smul.addr %s305, 8
          %s307 = scalar_lea.vmem [#allocation2], %s306
          %s308 = smul.u32 2, %s35
          %s310 = ssub.s32 128, 128
          %311 = vsyncadd %s304, %s310
          %s312 = smul.addr %s34, 2
          %s313 = sadd.s32 %s308, %s312
          %s314 = smul.addr %s313, 64
          %s315 = scalar_lea.hbm %s0, %s314
          %s317 = sshll.u32 %s307, 4
          %s318 = int_to_ptr.vmem [resolvable:$true] %s317
          %320 = dma.hbm_to_vmem [thread:$0]  %s315, 128, %s318, %s304
        $region20: #{tpu_custom_call.1} parent=15 // pred_fallthru
          _
        // Predicated region
        $region21: #{tpu_custom_call.1} parent=15 // pred_check
          %p321 = pneg %p89
        $region22: #{tpu_custom_call.1} parent=15 // pred_check_branch
          %323 = sbr.rel (%p321) target = $region24
        $region23: #{tpu_custom_call.1} parent=15 // pred_region
          %s324 = sand.u32 %s79, 1
          %s325 = scalar_lea.sflag [#allocation6], %s324
          %s326 = sand.u32 %s79, 1
          %s327 = smul.addr %s326, 2
          %s328 = scalar_lea.vmem [#allocation5], %s327
          %s329 = smul.u32 2, %s35
          %s331 = ssub.s32 32, 32
          %332 = vsyncadd %s325, %s331
          %s333 = smul.addr %s34, 2
          %s334 = sadd.s32 %s329, %s333
          %s335 = smul.addr %s334, 16
          %s336 = scalar_lea.hbm %s1, %s335
          %s338 = sshll.u32 %s328, 4
          %s339 = int_to_ptr.vmem [resolvable:$true] %s338
          %341 = dma.hbm_to_vmem [thread:$0]  %s336, 32, %s339, %s325
        $region24: #{tpu_custom_call.1} parent=15 // pred_fallthru
          _
      $region16: #{tpu_custom_call.1} parent=5 // pred_fallthru
        _
      %p342 = scmp.le.s32.totalorder 1, %s27
      %p343 = scmp.lt.s32.totalorder %s27, 5
      %p344 = pnand %p342, %p343
      %p345 = pneg %p344
      // Predicated region
      $region25: #{tpu_custom_call.1} parent=5 // pred_check
        _
      $region26: #{tpu_custom_call.1} parent=5 // pred_check_branch
        %347 = sbr.rel (%p344) target = $region28
      $region27: #{tpu_custom_call.1} parent=5 // pred_region
        %s348 = ssub.s32 %s27, 1
        %s349 = sand.u32 %s54, 1
        %s350 = scalar_lea.sflag [#allocation3], %s349
        %s351 = sand.u32 %s54, 1
        %s352 = smul.addr %s351, 8
        %s353 = scalar_lea.vmem [#allocation2], %s352
        // Predicated region
        $region29: #{tpu_custom_call.1} parent=27 // pred_check
          %p354 = pneg %p67
        $region30: #{tpu_custom_call.1} parent=27 // pred_check_branch
          %356 = sbr.rel (%p354) target = $region32
        $region31: #{tpu_custom_call.1} parent=27 // pred_region
          %357 = dma.done %s350, 128
        $region32: #{tpu_custom_call.1} parent=27 // pred_fallthru
          _
        %s358 = sand.u32 %s82, 1
        %s359 = scalar_lea.sflag [#allocation6], %s358
        %s360 = sand.u32 %s82, 1
        %s361 = smul.addr %s360, 2
        %s362 = scalar_lea.vmem [#allocation5], %s361
        // Predicated region
        $region33: #{tpu_custom_call.1} parent=27 // pred_check
          %p363 = pneg %p95
        $region34: #{tpu_custom_call.1} parent=27 // pred_check_branch
          %365 = sbr.rel (%p363) target = $region36
        $region35: #{tpu_custom_call.1} parent=27 // pred_region
          %366 = dma.done %s359, 32
        $region36: #{tpu_custom_call.1} parent=27 // pred_fallthru
          _
        %s367 = sand.u32 %s54, 1
        %s368 = scalar_lea.sflag [#allocation3], %s367
        %s369 = sand.u32 %s54, 1
        %s370 = smul.addr %s369, 8
        %s371 = scalar_lea.vmem [#allocation2], %s370
        %p372 = pneg %p67
        %p373 = pneg %p64
        %s374 = sand.u32 %s82, 1
        %s375 = scalar_lea.sflag [#allocation6], %s374
        %s376 = sand.u32 %s82, 1
        %s377 = smul.addr %s376, 2
        %s378 = scalar_lea.vmem [#allocation5], %s377
        %p379 = pneg %p95
        %p380 = pneg %p92
        %p381 = pneg %p123
        %p382 = pneg %p120
        %s383 = sand.u32 %s110, 1
        %s384 = scalar_lea.sflag [#allocation4], %s383
        %s385 = sand.u32 %s110, 1
        %s386 = smul.addr %s385, 2
        %s387 = scalar_lea.vmem [#allocation7], %s386
        %p388 = pneg %p151
        %p389 = pneg %p148
        %s390 = sand.u32 %s138, 1
        %s391 = scalar_lea.sflag [#allocation9], %s390
        %s392 = sand.u32 %s138, 1
        %s393 = smul.addr %s392, 2
        %s394 = scalar_lea.vmem [#allocation8], %s393
        %p395 = pneg %p177
        %p396 = pneg %p174
        %p397 = scmp.lt.s32.totalorder %s36, 3
        %s398 = scalar_select %p397, %s36, 3
        %s399 = smul.addr %s398, 4
        %s400 = scalar_lea.vmem %s4, %s399
        %p401 = pneg %p203
        %p402 = pneg %p200
        %p403 = scmp.lt.s32.totalorder %s36, 3
        %s404 = scalar_select %p403, %s36, 3
        %s405 = smul.addr %s404, 4
        %s406 = scalar_lea.vmem %s5, %s405
        %p407 = pneg %p229
        %p408 = pneg %p226
        %p409 = scmp.lt.s32.totalorder %s36, 3
        %s410 = scalar_select %p409, %s36, 3
        %s411 = scalar_lea.vmem %s6, %s410
        %p412 = pneg %p255
        %p413 = pneg %p252
        %p414 = scmp.lt.s32.totalorder %s36, 3
        %s415 = scalar_select %p414, %s36, 3
        %s416 = scalar_lea.vmem %s7, %s415
        %p417 = pneg %p281
        %p418 = pneg %p278
        %p419 = scmp.lt.s32.totalorder %s36, 3
        %s420 = scalar_select %p419, %s36, 3
        %s421 = scalar_lea.vmem %s8, %s420
        %s422 = smul.u32 2, %s37
        %s423 = smul.u32 2, %s37
        %s424 = smul.u32 2, %s37
        %s425 = smul.u32 2, %s37
        %p426 = scmp.lt.s32.totalorder %s36, 3
        %s427 = scalar_select %p426, %s36, 3
        %s428 = smul.addr %s427, 4
        %s429 = scalar_lea.vmem %s4, %s428
        %p430 = scmp.lt.s32.totalorder %s36, 3
        %s431 = scalar_select %p430, %s36, 3
        %s432 = smul.addr %s431, 4
        %s433 = scalar_lea.vmem %s5, %s432
        %p434 = scmp.lt.s32.totalorder %s36, 3
        %s435 = scalar_select %p434, %s36, 3
        %s436 = scalar_lea.vmem %s6, %s435
        %p437 = scmp.lt.s32.totalorder %s36, 3
        %s438 = scalar_select %p437, %s36, 3
        %s439 = scalar_lea.vmem %s7, %s438
        %p440 = scmp.lt.s32.totalorder %s36, 3
        %s441 = scalar_select %p440, %s36, 3
        %s442 = scalar_lea.vmem %s8, %s441
        %p443 = scmp.eq.s32.totalorder %s37, 0
        // Predicated region
        $region37: #{tpu_custom_call.1} parent=27 // pred_check
          %p444 = pneg %p443
        $region38: #{tpu_custom_call.1} parent=27 // pred_check_branch
          %446 = sbr.rel (%p444) target = $region40
        $region39: #{tpu_custom_call.1} parent=27 // pred_region
          %vm447 = vcmask 3072
          %448 = vst.msk [vmem:[%s429] sm:$0xf] %vm447, 0.0
          %449 = vst.msk [vmem:[%s433] sm:$0xf] %vm447, 0.0
          %vm450 = vcmask 0
          %451 = vst.msk [vmem:[%s436] sm:$0x1] %vm450, 0.0
          %452 = vst.msk [vmem:[%s439] sm:$0x1] %vm450, 0.0
          %453 = vst.msk [vmem:[%s442] sm:$0x1] %vm450, 0.0
        $region40: #{tpu_custom_call.1} parent=27 // pred_fallthru
          _
        %v454 = vld [vmem:[%s353] sm:$0xff]
        %v455 = vld [vmem:[%s362] sm:$0x3]
        %v456 = vlaneseq
        %v457 = vshrl.u32 %v456, 7
        %v458 = vlaneseq
        %v459 = vshrl.u32 %v458, 7
        %v460 = vsub.s32 0, %v459
        %v461 = vrot.slane %v455, %v460
        %v462 = vlaneseq
        %v463 = vshrl.u32 %v462, 7
        %v464 = vsub.s32 1, %v463
        %v465 = vrot.slane %v455, %v464
        %vm466 = vcmp.eq.s32.totalorder %v461, %v457
        %vm467 = vcmp.eq.s32.totalorder %v465, %v457
        %v468 = vsel %vm466, 1, 0
        %v469 = vsel %vm467, 1, 0
        %v470 = vcvt.s32.f32 %v468
        %v471 = vcvt.s32.f32 %v469
        %v473 = vcombine.high %v454, %v454
        %vm475 = vcmask 1043456
        %v476 = vsel %vm475, %v454, -inf
        %v477 = vrot.slane %v476, 4
        %v478 = vmax.f32 %v476, %v477
        %v479 = vrot.slane %v478, 2
        %v480 = vmax.f32 %v478, %v479
        %v481 = vrot.slane %v480, 1
        %v482 = vmax.f32 %v480, %v481
        %v483 = vsel %vm475, %v473, -inf
        %v484 = vrot.slane %v483, 4
        %v485 = vmax.f32 %v483, %v484
        %v486 = vrot.slane %v485, 2
        %v487 = vmax.f32 %v485, %v486
        %v488 = vrot.slane %v487, 1
        %v489 = vmax.f32 %v487, %v488
        %v492 = vcombine.low %v482, %v489
        %v494 = vsub.f32 %v454, %v492
        %v495 = vmul.f32 %v494, 1.442695
        %v496 = vpow.pop %v495
        %v498 = vcombine.high %v496, %v496
        %v500 = vsel %vm475, %v496, 0.0
        %v501 = vrot.slane %v500, 4
        %v502 = vadd.f32 %v500, %v501
        %v503 = vrot.slane %v502, 2
        %v504 = vadd.f32 %v502, %v503
        %v505 = vrot.slane %v504, 1
        %v506 = vadd.f32 %v504, %v505
        %v507 = vsel %vm475, %v498, 0.0
        %v508 = vrot.slane %v507, 4
        %v509 = vadd.f32 %v507, %v508
        %v510 = vrot.slane %v509, 2
        %v511 = vadd.f32 %v509, %v510
        %v512 = vrot.slane %v511, 1
        %v513 = vadd.f32 %v511, %v512
        %v514 = vlog2.pop %v506
        %v515 = vmul.f32 %v514, 0.6931472
        %v516 = vlog2.pop %v513
        %v517 = vmul.f32 %v516, 0.6931472
        %v518 = vadd.f32 %v515, %v482
        %v519 = vadd.f32 %v517, %v489
        %v522 = vcombine.low %v470, %v471
        %v524 = vmul.f32 %v454, %v522
        %v526 = vcombine.high %v524, %v524
        %v528 = vsel %vm475, %v524, 0.0
        %v529 = vrot.slane %v528, 4
        %v530 = vadd.f32 %v528, %v529
        %v531 = vrot.slane %v530, 2
        %v532 = vadd.f32 %v530, %v531
        %v533 = vrot.slane %v532, 1
        %v534 = vadd.f32 %v532, %v533
        %v535 = vsel %vm475, %v526, 0.0
        %v536 = vrot.slane %v535, 4
        %v537 = vadd.f32 %v535, %v536
        %v538 = vrot.slane %v537, 2
        %v539 = vadd.f32 %v537, %v538
        %v540 = vrot.slane %v539, 1
        %v541 = vadd.f32 %v539, %v540
        %v542 = vsub.f32 %v518, %v534
        %v543 = vsub.f32 %v519, %v541
        %v546 = vcombine.low %v542, %v543
        %v548 = vunpack.c.l.s4 1966171168
        %v549 = vunpack.c.0.s8 %v548
        %v550 = vlaneseq
        %v551 = vshrl.u32 %v550, 7
        %v552 = vsub.s32 %v549, %v551
        %v553 = vrot.slane %v546, %v552
        %v555 = vunpack.c.l.s4 1966171168
        %v556 = vunpack.c.0.s8 %v555
        %v557 = vlaneseq
        %v558 = vshrl.u32 %v557, 7
        %v559 = vsub.s32 %v556, %v558
        %v560 = vrot.slane %v553, %v559
        %v562 = vlaneseq
        %vm563 = vcmp.ge.s32.totalorder %v562, 0
        %vm564 = vcmp.lt.s32.totalorder %v562, 256
        %vm565 = vmand %vm563, %vm564
        %566 = vst.msk [vmem:[%s387] sm:$0x3] %vm565, %v560
        %vm567 = vcmp.ge.f32.partialorder %v454, %v492
        %v568 = vcvt.s32.f32 %v457
        %v571 = vunpack.c.l.s4 839922192
        %v572 = vunpack.c.0.s8 %v571
        %v573 = vlaneseq
        %v574 = vshrl.u32 %v573, 7
        %v575 = vsub.s32 %v572, %v574
        %v576 = vrot.slane %v568, %v575
        %v578 = vsel %vm567, %v576, 4.0
        %v580 = vcombine.high %v578, %v578
        %v582 = vsel %vm475, %v578, inf
        %v583 = vrot.slane %v582, 4
        %v584 = vmin.f32 %v582, %v583
        %v585 = vrot.slane %v584, 2
        %v586 = vmin.f32 %v584, %v585
        %v587 = vrot.slane %v586, 1
        %v588 = vmin.f32 %v586, %v587
        %v589 = vsel %vm475, %v580, inf
        %v590 = vrot.slane %v589, 4
        %v591 = vmin.f32 %v589, %v590
        %v592 = vrot.slane %v591, 2
        %v593 = vmin.f32 %v591, %v592
        %v594 = vrot.slane %v593, 1
        %v595 = vmin.f32 %v593, %v594
        %v596 = vcvt.f32.s32.to.zero.pseudo %v588
        %v597 = vcvt.f32.s32.to.zero.pseudo %v595
        %v598 = vcombine.low %v596, %v597
        %v600 = vunpack.c.l.s4 1966171168
        %v601 = vunpack.c.0.s8 %v600
        %v602 = vlaneseq
        %v603 = vshrl.u32 %v602, 7
        %v604 = vsub.s32 %v601, %v603
        %v605 = vrot.slane %v598, %v604
        %v607 = vunpack.c.l.s4 1966171168
        %v608 = vunpack.c.0.s8 %v607
        %v609 = vlaneseq
        %v610 = vshrl.u32 %v609, 7
        %v611 = vsub.s32 %v608, %v610
        %v612 = vrot.slane %v605, %v611
        %613 = vst.msk [vmem:[%s394] sm:$0x3] %vm565, %v612
        %v614 = vld [vmem:[%s429] sm:$0xf]
        %v615 = vsel %vm475, %v470, 0.0
        %v616 = vsel %vm475, %v471, 0.0
        %v617 = vadd.f32 %v615, %v616
        %618 = vadd.xlane.f32.xlu0 %v617
        %v619 = vpop.xlane.xlu0 %618
        %v620 = vadd.f32 %v614, %v619
        %vm621 = vcmask 3072
        %622 = vst.msk [vmem:[%s429] sm:$0xf] %vm621, %v620
        %v623 = vld [vmem:[%s433] sm:$0xf]
        %v624 = vmul.f32 %v470, %v542
        %v625 = vmul.f32 %v471, %v543
        %v626 = vsel %vm475, %v624, 0.0
        %v627 = vsel %vm475, %v625, 0.0
        %v628 = vadd.f32 %v626, %v627
        %629 = vadd.xlane.f32.xlu0 %v628
        %v630 = vpop.xlane.xlu0 %629
        %v631 = vadd.f32 %v623, %v630
        %632 = vst.msk [vmem:[%s433] sm:$0xf] %vm621, %v631
        %v633 = vsub.f32 0.0, %v454
        %v634 = vmul.f32 %v633, 1.442695
        %v635 = vpow.pop %v634
        %v636 = vadd.f32 %v635, 1.0
        %v637 = vrcp.pop %v636
        %v638 = vsub.f32 %v637, %v522
        %v639 = vand.u32 2147483647, %v638
        %v640 = vmul.f32 %v639, -2.0
        %v641 = vmul.f32 %v640, 1.442695
        %v642 = vpow.pop %v641
        %v643 = vadd.f32 %v642, 1.0
        %v644 = vlog2.pop %v643
        %v645 = vmul.f32 %v644, 0.6931472
        %v646 = vadd.f32 %v639, %v645
        %v647 = vsub.f32 %v646, 0.6931472
        %v648 = vld [vmem:[%s436] sm:$0x1]
        %v650 = vcombine.high %v647, %v647
        %v652 = vsel %vm475, %v647, 0.0
        %v653 = vsel %vm475, %v650, 0.0
        %v654 = vadd.f32 %v652, %v653
        %655 = vadd.xlane.f32.xlu0 %v654
        %v656 = vpop.xlane.xlu0 %655
        %v657 = vsel %vm475, %v656, 0.0
        %v658 = vrot.slane %v657, 4
        %v659 = vadd.f32 %v657, %v658
        %v660 = vrot.slane %v659, 2
        %v661 = vadd.f32 %v659, %v660
        %v662 = vrot.slane %v661, 1
        %v663 = vadd.f32 %v661, %v662
        %v664 = vadd.f32 %v648, %v663
        %vm665 = vcmask 0
        %666 = vst.msk [vmem:[%s436] sm:$0x1] %vm665, %v664
        %v667 = vld [vmem:[%s439] sm:$0x1]
        %v668 = vmul.f32 %v637, %v522
        %v670 = vcombine.high %v668, %v668
        %v672 = vsel %vm475, %v668, 0.0
        %v673 = vsel %vm475, %v670, 0.0
        %v674 = vadd.f32 %v672, %v673
        %675 = vadd.xlane.f32.xlu0 %v674
        %v676 = vpop.xlane.xlu0 %675
        %v677 = vsel %vm475, %v676, 0.0
        %v678 = vrot.slane %v677, 4
        %v679 = vadd.f32 %v677, %v678
        %v680 = vrot.slane %v679, 2
        %v681 = vadd.f32 %v679, %v680
        %v682 = vrot.slane %v681, 1
        %v683 = vadd.f32 %v681, %v682
        %v684 = vadd.f32 %v667, %v683
        %685 = vst.msk [vmem:[%s439] sm:$0x1] %vm665, %v684
        %v686 = vld [vmem:[%s442] sm:$0x1]
        %v688 = vcombine.high %v637, %v637
        %v690 = vsel %vm475, %v637, 0.0
        %v691 = vsel %vm475, %v688, 0.0
        %v692 = vadd.f32 %v690, %v691
        %693 = vadd.xlane.f32.xlu0 %v692
        %v694 = vpop.xlane.xlu0 %693
        %v695 = vsel %vm475, %v694, 0.0
        %v696 = vrot.slane %v695, 4
        %v697 = vadd.f32 %v695, %v696
        %v698 = vrot.slane %v697, 2
        %v699 = vadd.f32 %v697, %v698
        %v700 = vrot.slane %v699, 1
        %v701 = vadd.f32 %v699, %v700
        %v702 = vadd.f32 %v686, %v701
        %703 = vst.msk [vmem:[%s442] sm:$0x1] %vm665, %v702
        %s704 = sand.u32 %s110, 1
        %s705 = scalar_lea.sflag [#allocation4], %s704
        %s706 = sand.u32 %s110, 1
        %s707 = smul.addr %s706, 2
        %s708 = scalar_lea.vmem [#allocation7], %s707
        %s709 = sand.u32 %s138, 1
        %s710 = scalar_lea.sflag [#allocation9], %s709
        %s711 = sand.u32 %s138, 1
        %s712 = smul.addr %s711, 2
        %s713 = scalar_lea.vmem [#allocation8], %s712
        %p714 = scmp.lt.s32.totalorder %s36, 3
        %s715 = scalar_select %p714, %s36, 3
        %s716 = smul.addr %s715, 4
        %s717 = scalar_lea.vmem %s4, %s716
        %p718 = scmp.lt.s32.totalorder %s36, 3
        %s719 = scalar_select %p718, %s36, 3
        %s720 = smul.addr %s719, 4
        %s721 = scalar_lea.vmem %s5, %s720
        %p722 = scmp.lt.s32.totalorder %s36, 3
        %s723 = scalar_select %p722, %s36, 3
        %s724 = scalar_lea.vmem %s6, %s723
        %p725 = scmp.lt.s32.totalorder %s36, 3
        %s726 = scalar_select %p725, %s36, 3
        %s727 = scalar_lea.vmem %s7, %s726
        %p728 = scmp.lt.s32.totalorder %s36, 3
        %s729 = scalar_select %p728, %s36, 3
        %s730 = scalar_lea.vmem %s8, %s729
        // Predicated region
        $region41: #{tpu_custom_call.1} parent=27 // pred_check
          %p731 = pneg %p120
        $region42: #{tpu_custom_call.1} parent=27 // pred_check_branch
          %733 = sbr.rel (%p731) target = $region44
        $region43: #{tpu_custom_call.1} parent=27 // pred_region
          %s734 = smul.u32 2, %s37
          %s736 = ssub.s32 32, 32
          %737 = vsyncadd %s705, %s736
          %s738 = smul.addr %s36, 2
          %s739 = sadd.s32 %s734, %s738
          %s740 = smul.addr %s739, 16
          %s741 = scalar_lea.hbm %s2, %s740
          %s743 = sshll.u32 %s708, 4
          %s744 = int_to_ptr.vmem [resolvable:$true] %s743
          %746 = dma.vmem_to_hbm [thread:$0]  %s744, 32, %s741, %s705
        $region44: #{tpu_custom_call.1} parent=27 // pred_fallthru
          _
        // Predicated region
        $region45: #{tpu_custom_call.1} parent=27 // pred_check
          %p747 = pneg %p148
        $region46: #{tpu_custom_call.1} parent=27 // pred_check_branch
          %749 = sbr.rel (%p747) target = $region48
        $region47: #{tpu_custom_call.1} parent=27 // pred_region
          %s750 = smul.u32 2, %s37
          %s752 = ssub.s32 32, 32
          %753 = vsyncadd %s710, %s752
          %s754 = smul.addr %s36, 2
          %s755 = sadd.s32 %s750, %s754
          %s756 = smul.addr %s755, 16
          %s757 = scalar_lea.hbm %s3, %s756
          %s759 = sshll.u32 %s713, 4
          %s760 = int_to_ptr.vmem [resolvable:$true] %s759
          %762 = dma.vmem_to_hbm [thread:$0]  %s760, 32, %s757, %s710
        $region48: #{tpu_custom_call.1} parent=27 // pred_fallthru
          _
        // Predicated region
        $region49: #{tpu_custom_call.1} parent=27 // pred_check
          %p763 = pneg %p174
        $region50: #{tpu_custom_call.1} parent=27 // pred_check_branch
          %765 = sbr.rel (%p763) target = $region52
        $region51: #{tpu_custom_call.1} parent=27 // pred_region
          _
        $region52: #{tpu_custom_call.1} parent=27 // pred_fallthru
          _
        // Predicated region
        $region53: #{tpu_custom_call.1} parent=27 // pred_check
          %p766 = pneg %p200
        $region54: #{tpu_custom_call.1} parent=27 // pred_check_branch
          %768 = sbr.rel (%p766) target = $region56
        $region55: #{tpu_custom_call.1} parent=27 // pred_region
          _
        $region56: #{tpu_custom_call.1} parent=27 // pred_fallthru
          _
        // Predicated region
        $region57: #{tpu_custom_call.1} parent=27 // pred_check
          %p769 = pneg %p226
        $region58: #{tpu_custom_call.1} parent=27 // pred_check_branch
          %771 = sbr.rel (%p769) target = $region60
        $region59: #{tpu_custom_call.1} parent=27 // pred_region
          _
        $region60: #{tpu_custom_call.1} parent=27 // pred_fallthru
          _
        // Predicated region
        $region61: #{tpu_custom_call.1} parent=27 // pred_check
          %p772 = pneg %p252
        $region62: #{tpu_custom_call.1} parent=27 // pred_check_branch
          %774 = sbr.rel (%p772) target = $region64
        $region63: #{tpu_custom_call.1} parent=27 // pred_region
          _
        $region64: #{tpu_custom_call.1} parent=27 // pred_fallthru
          _
        // Predicated region
        $region65: #{tpu_custom_call.1} parent=27 // pred_check
          %p775 = pneg %p278
        $region66: #{tpu_custom_call.1} parent=27 // pred_check_branch
          %777 = sbr.rel (%p775) target = $region68
        $region67: #{tpu_custom_call.1} parent=27 // pred_region
          _
        $region68: #{tpu_custom_call.1} parent=27 // pred_fallthru
          _
      $region28: #{tpu_custom_call.1} parent=5 // pred_fallthru
        _
      %p778 = scmp.le.s32.totalorder 2, %s27
      // Predicated region
      $region69: #{tpu_custom_call.1} parent=5 // pred_check
        %p779 = pneg %p778
      $region70: #{tpu_custom_call.1} parent=5 // pred_check_branch
        %781 = sbr.rel (%p779) target = $region72
      $region71: #{tpu_custom_call.1} parent=5 // pred_region
        %s782 = ssub.s32 %s27, 2
        // Predicated region
        $region73: #{tpu_custom_call.1} parent=71 // pred_check
          %p783 = pneg %p126
        $region74: #{tpu_custom_call.1} parent=71 // pred_check_branch
          %785 = sbr.rel (%p783) target = $region76
        $region75: #{tpu_custom_call.1} parent=71 // pred_region
          %s786 = sand.u32 %s111, 1
          %s787 = scalar_lea.sflag [#allocation4], %s786
          %s788 = sand.u32 %s111, 1
          %s789 = smul.addr %s788, 2
          %s790 = scalar_lea.vmem [#allocation7], %s789
          %791 = dma.done %s787, 32
        $region76: #{tpu_custom_call.1} parent=71 // pred_fallthru
          _
        // Predicated region
        $region77: #{tpu_custom_call.1} parent=71 // pred_check
          %p792 = pneg %p154
        $region78: #{tpu_custom_call.1} parent=71 // pred_check_branch
          %794 = sbr.rel (%p792) target = $region80
        $region79: #{tpu_custom_call.1} parent=71 // pred_region
          %s795 = sand.u32 %s139, 1
          %s796 = scalar_lea.sflag [#allocation9], %s795
          %s797 = sand.u32 %s139, 1
          %s798 = smul.addr %s797, 2
          %s799 = scalar_lea.vmem [#allocation8], %s798
          %800 = dma.done %s796, 32
        $region80: #{tpu_custom_call.1} parent=71 // pred_fallthru
          _
        // Predicated region
        $region81: #{tpu_custom_call.1} parent=71 // pred_check
          %p801 = pneg %p180
        $region82: #{tpu_custom_call.1} parent=71 // pred_check_branch
          %803 = sbr.rel (%p801) target = $region84
        $region83: #{tpu_custom_call.1} parent=71 // pred_region
          %p804 = scmp.lt.s32.totalorder %s38, 3
          %s805 = scalar_select %p804, %s38, 3
          %s806 = smul.addr %s805, 4
          %s807 = scalar_lea.vmem %s4, %s806
        $region84: #{tpu_custom_call.1} parent=71 // pred_fallthru
          _
        // Predicated region
        $region85: #{tpu_custom_call.1} parent=71 // pred_check
          %p808 = pneg %p206
        $region86: #{tpu_custom_call.1} parent=71 // pred_check_branch
          %810 = sbr.rel (%p808) target = $region88
        $region87: #{tpu_custom_call.1} parent=71 // pred_region
          %p811 = scmp.lt.s32.totalorder %s38, 3
          %s812 = scalar_select %p811, %s38, 3
          %s813 = smul.addr %s812, 4
          %s814 = scalar_lea.vmem %s5, %s813
        $region88: #{tpu_custom_call.1} parent=71 // pred_fallthru
          _
        // Predicated region
        $region89: #{tpu_custom_call.1} parent=71 // pred_check
          %p815 = pneg %p232
        $region90: #{tpu_custom_call.1} parent=71 // pred_check_branch
          %817 = sbr.rel (%p815) target = $region92
        $region91: #{tpu_custom_call.1} parent=71 // pred_region
          %p818 = scmp.lt.s32.totalorder %s38, 3
          %s819 = scalar_select %p818, %s38, 3
          %s820 = scalar_lea.vmem %s6, %s819
        $region92: #{tpu_custom_call.1} parent=71 // pred_fallthru
          _
        // Predicated region
        $region93: #{tpu_custom_call.1} parent=71 // pred_check
          %p821 = pneg %p258
        $region94: #{tpu_custom_call.1} parent=71 // pred_check_branch
          %823 = sbr.rel (%p821) target = $region96
        $region95: #{tpu_custom_call.1} parent=71 // pred_region
          %p824 = scmp.lt.s32.totalorder %s38, 3
          %s825 = scalar_select %p824, %s38, 3
          %s826 = scalar_lea.vmem %s7, %s825
        $region96: #{tpu_custom_call.1} parent=71 // pred_fallthru
          _
        // Predicated region
        $region97: #{tpu_custom_call.1} parent=71 // pred_check
          %p827 = pneg %p284
        $region98: #{tpu_custom_call.1} parent=71 // pred_check_branch
          %829 = sbr.rel (%p827) target = $region100
        $region99: #{tpu_custom_call.1} parent=71 // pred_region
          %p830 = scmp.lt.s32.totalorder %s38, 3
          %s831 = scalar_select %p830, %s38, 3
          %s832 = scalar_lea.vmem %s8, %s831
        $region100: #{tpu_custom_call.1} parent=71 // pred_fallthru
          _
      $region72: #{tpu_custom_call.1} parent=5 // pred_fallthru
        _
    $region6: #{tpu_custom_call.1} parent=1 // loop_footer
      %s31 = sadd.s32 1, %s27
    $region7: #{tpu_custom_call.1} parent=1 // loop_footer_branch
      %26 = sbr.rel target = $region3
    $region8: #{tpu_custom_call.1} parent=1 // loop_exit
      _
    %833 = vsyncpa [#allocation3], 1
    %s834 = scalar_lea.sflag [#allocation3], 1
    %835 = vsyncpa %s834, 1
    %836 = vsyncpa [#allocation6], 1
    %s837 = scalar_lea.sflag [#allocation6], 1
    %838 = vsyncpa %s837, 1
    %839 = vsyncpa [#allocation4], 1
    %s840 = scalar_lea.sflag [#allocation4], 1
    %841 = vsyncpa %s840, 1
    %842 = vsyncpa [#allocation9], 1
    %s843 = scalar_lea.sflag [#allocation9], 1
    %844 = vsyncpa %s843, 1

</llo_original>
